<compile_context>
chip_gen: v5e
topology: v5e:2x2
jax: 0.10.0
libtpu: 0.0.40
codegen_flags: <defaults>
</compile_context>

<pallas_src>
import math

import jax
import jax.numpy as jnp
from jax import lax
from jax.experimental import pallas as pl
from jax.experimental.pallas import tpu as pltpu


def _sigmoid(x):
    # Numerically stable sigmoid that rides the EUP tanh slot.
    return 0.5 * (jnp.tanh(0.5 * x) + 1.0)


def encoder_kernel(featcat_ref, adj_ref, gn_ref,
                   w1b_ref, w2p_ref, wd1b_ref, bd1_ref, wd2b_ref, bd2_ref,
                   zz_ref, h_ref, dec_ref, ret_ref, arec_ref):
    f32 = jnp.float32
    two_f = w1b_ref.shape[1]          # 2 * out_features
    f_out = two_f // 2

    def mm(a, b):
        return jnp.dot(a, b, preferred_element_type=f32)

    adj = adj_ref[...]
    gn = gn_ref[...]

    # ---- fused GCN stage: one adj contraction for both paths ----
    # featcat = [feat | feat_a], w1_blk = blkdiag(w1, w1)  ->  [feat@w1 | feat_a@w1]
    pre = mm(featcat_ref[...], w1b_ref[...])      # (N, 2F)
    zz = mm(adj, pre)                             # [z | z_a]   (N, 2F)
    zz_ref[...] = zz                              # hiden_emb = cols [:F] (split in wrapper)

    # h = adj @ (z @ w2); w2 is zero-padded so the z_a half contributes nothing.
    h_ref[...] = mm(adj, mm(zz, w2p_ref[...]))    # (N, F_in)

    embcat = jnp.maximum(zz, 0.0)                 # [emb | emb_a] (F.relu)

    # ---- decoder MLP (Dropout 0.3 = identity in eval), single fused pass ----
    # Weights pre-transposed + block-diagonal in the wrapper -> no in-kernel .T
    y = jnp.maximum(mm(embcat, wd1b_ref[...]) + bd1_ref[...], 0.0)
    dec_ref[...] = mm(y, wd2b_ref[...]) + bd2_ref[...]      # [dec | dec_a]

    # ---- AvgReadout + sigmoid, both paths via one gn contraction ----
    row_sum = jnp.sum(gn, axis=1, keepdims=True)            # (N, 1)
    inv_rs = pl.reciprocal(row_sum, approx=True)            # EUP; scale cancels under normalize
    gcat = mm(gn, embcat) * inv_rs                          # [g | g_a]  (N, 2F)

    lane = lax.broadcasted_iota(jnp.int32, gcat.shape, 1)
    left = lane < f_out                                      # lanes of the clean path
    sq = gcat * gcat
    s_all = jnp.sum(sq, axis=1, keepdims=True)
    s_l = jnp.sum(jnp.where(left, sq, 0.0), axis=1, keepdims=True)
    s_r = s_all - s_l
    eps2 = 1e-24                                             # (F.normalize eps)**2
    scale = jnp.where(left,
                      lax.rsqrt(jnp.maximum(s_l, eps2)),
                      lax.rsqrt(jnp.maximum(s_r, eps2)))
    ret_ref[...] = _sigmoid(gcat * scale)                    # [ret | ret_a]

    # ---- InnerProductDecoder (dropout 0.1 = identity in eval) ----
    # emb @ emb.T with no transpose: contract last dims; mask zeroes emb_a half.
    memb = jnp.where(left, embcat, 0.0)
    arec_ref[...] = _sigmoid(
        lax.dot_general(memb, memb, (((1,), (1,)), ((), ())),
                        preferred_element_type=f32))


def _block_diag2(w):
    z = jnp.zeros_like(w)
    top = jnp.concatenate([w, z], axis=1)
    bot = jnp.concatenate([z, w], axis=1)
    return jnp.concatenate([top, bot], axis=0)


def encoder_forward(feat, feat_a, adj, graph_neigh, params):
    N, f_in = feat.shape
    f_out = params["weight1"].shape[1]
    f32 = jnp.float32

    # Wrapper-side (pure XLA) input prep: fused inputs, block-diag / padded /
    # pre-transposed weights, 2-D biases. Zero kernel cost.
    featcat = jnp.concatenate([feat, feat_a], axis=1)                    # (N, 2*F_in)
    w1_blk = _block_diag2(params["weight1"])                             # (2F_in, 2F_out)
    w2_pad = jnp.concatenate(
        [params["weight2"], jnp.zeros((f_out, f_in), f32)], axis=0)      # (2F_out, F_in)
    wd1_blk = _block_diag2(params["dec_W1"].T)                           # (2F, 2F)
    wd2_blk = _block_diag2(params["dec_W2"].T)                           # (2F, 2F)
    bd1_cat = jnp.tile(params["dec_b1"].reshape(1, -1), (1, 2))          # (1, 2F)
    bd2_cat = jnp.tile(params["dec_b2"].reshape(1, -1), (1, 2))          # (1, 2F)

    out_shape = (
        jax.ShapeDtypeStruct((N, 2 * f_out), f32),  # [z | z_a]
        jax.ShapeDtypeStruct((N, f_in), f32),       # h
        jax.ShapeDtypeStruct((N, 2 * f_out), f32),  # [dec | dec_a]
        jax.ShapeDtypeStruct((N, 2 * f_out), f32),  # [ret | ret_a]
        jax.ShapeDtypeStruct((N, N), f32),          # A_rec
    )

    vmem = pl.BlockSpec(memory_space=pltpu.MemorySpace.VMEM)

    # TODO(synk): for realistic graph sizes (N >> 16) add a tiled grid over N
    # for the adj / graph_neigh / A_rec N x N operands ("parallel" row/col
    # axes, "arbitrary" K axis) with generation-aware VMEM budgets (64 MiB on
    # v7x); whole-array VMEM residency is only appropriate at toy shapes.
    zz, h, dec_cat, ret_cat, a_rec = pl.pallas_call(
        encoder_kernel,
        out_shape=out_shape,
        in_specs=[vmem] * 9,
        out_specs=tuple(vmem for _ in range(5)),
    )(featcat, adj, graph_neigh,
      w1_blk, w2_pad, wd1_blk, bd1_cat, wd2_blk, bd2_cat)

    hiden = zz[:, :f_out]
    dec, dec_a = dec_cat[:, :f_out], dec_cat[:, f_out:]
    ret, ret_a = ret_cat[:, :f_out], ret_cat[:, f_out:]
    return hiden, h, dec, dec_a, a_rec, ret, ret_a


def _reference_forward(feat, feat_a, adj, graph_neigh, params):
    """Pure-JAX reference (mirrors the PyTorch forward in eval mode)."""
    w1, w2 = params["weight1"], params["weight2"]
    z = adj @ (feat @ w1)
    hiden = z
    h = adj @ (z @ w2)
    z_a = adj @ (feat_a @ w1)
    emb = jnp.maximum(z, 0.0)
    emb_a = jnp.maximum(z_a, 0.0)

    def decoder(x):
        y = jnp.maximum(x @ params["dec_W1"].T + params["dec_b1"], 0.0)
        return y @ params["dec_W2"].T + params["dec_b2"]

    dec, dec_a = decoder(emb), decoder(emb_a)
    row_sum = jnp.sum(graph_neigh, axis=1, keepdims=True)

    def readout(e):
        ge = (graph_neigh @ e) / row_sum
        nrm = jnp.maximum(jnp.linalg.norm(ge, axis=1, keepdims=True), 1e-12)
        return ge / nrm

    sig = lambda x: 1.0 / (1.0 + jnp.exp(-x))
    ret, ret_a = sig(readout(emb)), sig(readout(emb_a))
    a_rec = sig(emb @ emb.T)
    return hiden, h, dec, dec_a, a_rec, ret, ret_a


def _xavier_uniform(key, shape):
    fan_in, fan_out = shape
    bound = math.sqrt(6.0 / (fan_in + fan_out))
    return jax.random.uniform(key, shape, jnp.float32, -bound, bound)


if __name__ == "__main__":
    N, F_IN, F_OUT = 16, 32, 16

    key = jax.random.PRNGKey(0)
    keys = jax.random.split(key, 10)

    # deterministic parameter init (shapes from Encoder.__init__)
    params = {
        "weight1": _xavier_uniform(keys[0], (F_IN, F_OUT)),
        "weight2": _xavier_uniform(keys[1], (F_OUT, F_IN)),
        "dec_W1": _xavier_uniform(keys[2], (F_OUT, F_OUT)),
        "dec_b1": jax.random.uniform(keys[3], (F_OUT,), jnp.float32, -0.1, 0.1),
        "dec_W2": _xavier_uniform(keys[4], (F_OUT, F_OUT)),
        "dec_b2": jax.random.uniform(keys[5], (F_OUT,), jnp.float32, -0.1, 0.1),
    }

    feat = jax.random.normal(keys[6], (N, F_IN), jnp.float32)
    feat_a = jax.random.normal(keys[7], (N, F_IN), jnp.float32)
    adj = jax.random.uniform(keys[8], (N, N), jnp.float32)
    adj = adj / jnp.sum(adj, axis=1, keepdims=True)          # row-normalized
    graph_neigh = (jax.random.uniform(keys[9], (N, N)) > 0.5).astype(jnp.float32)
    graph_neigh = jnp.maximum(graph_neigh, jnp.eye(N, dtype=jnp.float32))  # no zero rows

    outs = encoder_forward(feat, feat_a, adj, graph_neigh, params)
    outs = jax.block_until_ready(outs)

    refs = _reference_forward(feat, feat_a, adj, graph_neigh, params)
    for o, r in zip(outs, refs):
        assert o.shape == r.shape and o.dtype == r.dtype
        assert jnp.allclose(o, r, atol=1e-4, rtol=1e-4), "mismatch vs reference"

    print("KERNEL_OK")
</pallas_src>

<mosaic_0001>
module attributes {stable_mosaic.version = 11 : i64} {
  func.func @encoder_kernel(%arg0: memref<16x64xf32, #tpu.memory_space<vmem>>, %arg1: memref<16x16xf32, #tpu.memory_space<vmem>>, %arg2: memref<16x16xf32, #tpu.memory_space<vmem>>, %arg3: memref<64x32xf32, #tpu.memory_space<vmem>>, %arg4: memref<32x32xf32, #tpu.memory_space<vmem>>, %arg5: memref<32x32xf32, #tpu.memory_space<vmem>>, %arg6: memref<1x32xf32, #tpu.memory_space<vmem>>, %arg7: memref<32x32xf32, #tpu.memory_space<vmem>>, %arg8: memref<1x32xf32, #tpu.memory_space<vmem>>, %arg9: memref<16x32xf32, #tpu.memory_space<vmem>>, %arg10: memref<16x32xf32, #tpu.memory_space<vmem>>, %arg11: memref<16x32xf32, #tpu.memory_space<vmem>>, %arg12: memref<16x32xf32, #tpu.memory_space<vmem>>, %arg13: memref<16x16xf32, #tpu.memory_space<vmem>>) attributes {dimension_semantics = [], scalar_prefetch = 0 : i64, scratch_operands = 0 : i64, tpu.core_type = #tpu.core_type<tc>} {
    %c0 = arith.constant 0 : index
    %c0_0 = arith.constant 0 : index
    %0 = vector.load %arg1[%c0, %c0_0] : memref<16x16xf32, #tpu.memory_space<vmem>>, vector<16x16xf32>
    %c0_1 = arith.constant 0 : index
    %c0_2 = arith.constant 0 : index
    %1 = vector.load %arg2[%c0_1, %c0_2] : memref<16x16xf32, #tpu.memory_space<vmem>>, vector<16x16xf32>
    %c0_3 = arith.constant 0 : index
    %c0_4 = arith.constant 0 : index
    %2 = vector.load %arg0[%c0_3, %c0_4] : memref<16x64xf32, #tpu.memory_space<vmem>>, vector<16x64xf32>
    %c0_5 = arith.constant 0 : index
    %c0_6 = arith.constant 0 : index
    %3 = vector.load %arg3[%c0_5, %c0_6] : memref<64x32xf32, #tpu.memory_space<vmem>>, vector<64x32xf32>
    %cst = arith.constant dense<0.000000e+00> : vector<16x32xf32>
    %4 = tpu.matmul %2, %3, %cst {dimension_numbers = #tpu.dot_dimension_numbers<[1], [0], [0], [1], [0, 0, 1, 1], [], []>} : vector<16x64xf32>, vector<64x32xf32>, vector<16x32xf32> -> vector<16x32xf32>
    %cst_7 = arith.constant dense<0.000000e+00> : vector<16x32xf32>
    %5 = tpu.matmul %0, %4, %cst_7 {dimension_numbers = #tpu.dot_dimension_numbers<[1], [0], [0], [1], [0, 0, 1, 1], [], []>} : vector<16x16xf32>, vector<16x32xf32>, vector<16x32xf32> -> vector<16x32xf32>
    %c0_8 = arith.constant 0 : index
    %c0_9 = arith.constant 0 : index
    %6 = vector.load %arg9[%c0_8, %c0_9] : memref<16x32xf32, #tpu.memory_space<vmem>>, vector<16x32xf32>
    tpu.vector_store %arg9[%c0_8, %c0_9], %5 {strides = array<i32>} : memref<16x32xf32, #tpu.memory_space<vmem>>, vector<16x32xf32>,
    %c0_10 = arith.constant 0 : index
    %c0_11 = arith.constant 0 : index
    %7 = vector.load %arg4[%c0_10, %c0_11] : memref<32x32xf32, #tpu.memory_space<vmem>>, vector<32x32xf32>
    %cst_12 = arith.constant dense<0.000000e+00> : vector<16x32xf32>
    %8 = tpu.matmul %5, %7, %cst_12 {dimension_numbers = #tpu.dot_dimension_numbers<[1], [0], [0], [1], [0, 0, 1, 1], [], []>} : vector<16x32xf32>, vector<32x32xf32>, vector<16x32xf32> -> vector<16x32xf32>
    %cst_13 = arith.constant dense<0.000000e+00> : vector<16x32xf32>
    %9 = tpu.matmul %0, %8, %cst_13 {dimension_numbers = #tpu.dot_dimension_numbers<[1], [0], [0], [1], [0, 0, 1, 1], [], []>} : vector<16x16xf32>, vector<16x32xf32>, vector<16x32xf32> -> vector<16x32xf32>
    %c0_14 = arith.constant 0 : index
    %c0_15 = arith.constant 0 : index
    %10 = vector.load %arg10[%c0_14, %c0_15] : memref<16x32xf32, #tpu.memory_space<vmem>>, vector<16x32xf32>
    tpu.vector_store %arg10[%c0_14, %c0_15], %9 {strides = array<i32>} : memref<16x32xf32, #tpu.memory_space<vmem>>, vector<16x32xf32>,
    %cst_16 = arith.constant 0.000000e+00 : f32
    %11 = vector.broadcast %cst_16 : f32 to vector<16x32xf32>
    %12 = arith.maximumf %5, %11 : vector<16x32xf32>
    %c0_17 = arith.constant 0 : index
    %c0_18 = arith.constant 0 : index
    %13 = vector.load %arg5[%c0_17, %c0_18] : memref<32x32xf32, #tpu.memory_space<vmem>>, vector<32x32xf32>
    %cst_19 = arith.constant dense<0.000000e+00> : vector<16x32xf32>
    %14 = tpu.matmul %12, %13, %cst_19 {dimension_numbers = #tpu.dot_dimension_numbers<[1], [0], [0], [1], [0, 0, 1, 1], [], []>} : vector<16x32xf32>, vector<32x32xf32>, vector<16x32xf32> -> vector<16x32xf32>
    %c0_20 = arith.constant 0 : index
    %c0_21 = arith.constant 0 : index
    %15 = vector.load %arg6[%c0_20, %c0_21] : memref<1x32xf32, #tpu.memory_space<vmem>>, vector<1x32xf32>
    %16 = vector.broadcast %15 : vector<1x32xf32> to vector<16x32xf32>
    %17 = arith.addf %14, %16 : vector<16x32xf32>
    %cst_22 = arith.constant 0.000000e+00 : f32
    %18 = vector.broadcast %cst_22 : f32 to vector<16x32xf32>
    %19 = arith.maximumf %17, %18 : vector<16x32xf32>
    %c0_23 = arith.constant 0 : index
    %c0_24 = arith.constant 0 : index
    %20 = vector.load %arg7[%c0_23, %c0_24] : memref<32x32xf32, #tpu.memory_space<vmem>>, vector<32x32xf32>
    %cst_25 = arith.constant dense<0.000000e+00> : vector<16x32xf32>
    %21 = tpu.matmul %19, %20, %cst_25 {dimension_numbers = #tpu.dot_dimension_numbers<[1], [0], [0], [1], [0, 0, 1, 1], [], []>} : vector<16x32xf32>, vector<32x32xf32>, vector<16x32xf32> -> vector<16x32xf32>
    %c0_26 = arith.constant 0 : index
    %c0_27 = arith.constant 0 : index
    %22 = vector.load %arg8[%c0_26, %c0_27] : memref<1x32xf32, #tpu.memory_space<vmem>>, vector<1x32xf32>
    %23 = vector.broadcast %22 : vector<1x32xf32> to vector<16x32xf32>
    %24 = arith.addf %21, %23 : vector<16x32xf32>
    %c0_28 = arith.constant 0 : index
    %c0_29 = arith.constant 0 : index
    %25 = vector.load %arg11[%c0_28, %c0_29] : memref<16x32xf32, #tpu.memory_space<vmem>>, vector<16x32xf32>
    tpu.vector_store %arg11[%c0_28, %c0_29], %24 {strides = array<i32>} : memref<16x32xf32, #tpu.memory_space<vmem>>, vector<16x32xf32>,
    %cst_30 = arith.constant dense<0.000000e+00> : vector<16xf32>
    %26 = vector.multi_reduction <add>, %1, %cst_30 [1] : vector<16x16xf32> to vector<16xf32>
    %27 = vector.shape_cast %26 : vector<16xf32> to vector<16x1xf32>
    %28 = tpu.reciprocal %27 {approx = true} : vector<16x1xf32> -> vector<16x1xf32>
    %cst_31 = arith.constant dense<0.000000e+00> : vector<16x32xf32>
    %29 = tpu.matmul %1, %12, %cst_31 {dimension_numbers = #tpu.dot_dimension_numbers<[1], [0], [0], [1], [0, 0, 1, 1], [], []>} : vector<16x16xf32>, vector<16x32xf32>, vector<16x32xf32> -> vector<16x32xf32>
    %30 = vector.broadcast %28 : vector<16x1xf32> to vector<16x32xf32>
    %31 = arith.mulf %29, %30 : vector<16x32xf32>
    %32 = tpu.iota {dimensions = array<i32: 1>} : vector<16x32xi32>
    %c16_i32 = arith.constant 16 : i32
    %33 = vector.broadcast %c16_i32 : i32 to vector<16x32xi32>
    %34 = arith.cmpi slt, %32, %33 : vector<16x32xi32>
    %35 = arith.mulf %31, %31 : vector<16x32xf32>
    %cst_32 = arith.constant dense<0.000000e+00> : vector<16xf32>
    %36 = vector.multi_reduction <add>, %35, %cst_32 [1] : vector<16x32xf32> to vector<16xf32>
    %37 = vector.shape_cast %36 : vector<16xf32> to vector<16x1xf32>
    %cst_33 = arith.constant 0.000000e+00 : f32
    %38 = vector.broadcast %cst_33 : f32 to vector<16x32xf32>
    %39 = arith.select %34, %35, %38 : vector<16x32xi1>, vector<16x32xf32>
    %cst_34 = arith.constant dense<0.000000e+00> : vector<16xf32>
    %40 = vector.multi_reduction <add>, %39, %cst_34 [1] : vector<16x32xf32> to vector<16xf32>
    %41 = vector.shape_cast %40 : vector<16xf32> to vector<16x1xf32>
    %42 = arith.subf %37, %41 : vector<16x1xf32>
    %cst_35 = arith.constant 1.000000e-24 : f32
    %43 = vector.broadcast %cst_35 : f32 to vector<16x1xf32>
    %44 = arith.maximumf %41, %43 : vector<16x1xf32>
    %45 = math.rsqrt %44 : vector<16x1xf32>
    %cst_36 = arith.constant 1.000000e-24 : f32
    %46 = vector.broadcast %cst_36 : f32 to vector<16x1xf32>
    %47 = arith.maximumf %42, %46 : vector<16x1xf32>
    %48 = math.rsqrt %47 : vector<16x1xf32>
    %49 = vector.shape_cast %45 : vector<16x1xf32> to vector<16x1xf32>
    %50 = vector.broadcast %49 : vector<16x1xf32> to vector<16x32xf32>
    %51 = vector.shape_cast %48 : vector<16x1xf32> to vector<16x1xf32>
    %52 = vector.broadcast %51 : vector<16x1xf32> to vector<16x32xf32>
    %53 = arith.select %34, %50, %52 : vector<16x32xi1>, vector<16x32xf32>
    %54 = arith.mulf %31, %53 : vector<16x32xf32>
    %cst_37 = arith.constant 5.000000e-01 : f32
    %55 = vector.broadcast %cst_37 : f32 to vector<16x32xf32>
    %56 = arith.mulf %55, %54 : vector<16x32xf32>
    %57 = math.tanh %56 : vector<16x32xf32>
    %cst_38 = arith.constant 1.000000e+00 : f32
    %58 = vector.broadcast %cst_38 : f32 to vector<16x32xf32>
    %59 = arith.addf %57, %58 : vector<16x32xf32>
    %cst_39 = arith.constant 5.000000e-01 : f32
    %60 = vector.broadcast %cst_39 : f32 to vector<16x32xf32>
    %61 = arith.mulf %60, %59 : vector<16x32xf32>
    %c0_40 = arith.constant 0 : index
    %c0_41 = arith.constant 0 : index
    %62 = vector.load %arg12[%c0_40, %c0_41] : memref<16x32xf32, #tpu.memory_space<vmem>>, vector<16x32xf32>
    tpu.vector_store %arg12[%c0_40, %c0_41], %61 {strides = array<i32>} : memref<16x32xf32, #tpu.memory_space<vmem>>, vector<16x32xf32>,
    %cst_42 = arith.constant 0.000000e+00 : f32
    %63 = vector.broadcast %cst_42 : f32 to vector<16x32xf32>
    %64 = arith.select %34, %12, %63 : vector<16x32xi1>, vector<16x32xf32>
    %cst_43 = arith.constant dense<0.000000e+00> : vector<16x16xf32>
    %65 = tpu.matmul %64, %64, %cst_43 {dimension_numbers = #tpu.dot_dimension_numbers<[1], [1], [0], [0], [0, 0, 1, 0], [], []>} : vector<16x32xf32>, vector<16x32xf32>, vector<16x16xf32> -> vector<16x16xf32>
    %cst_44 = arith.constant 5.000000e-01 : f32
    %66 = vector.broadcast %cst_44 : f32 to vector<16x16xf32>
    %67 = arith.mulf %66, %65 : vector<16x16xf32>
    %68 = math.tanh %67 : vector<16x16xf32>
    %cst_45 = arith.constant 1.000000e+00 : f32
    %69 = vector.broadcast %cst_45 : f32 to vector<16x16xf32>
    %70 = arith.addf %68, %69 : vector<16x16xf32>
    %cst_46 = arith.constant 5.000000e-01 : f32
    %71 = vector.broadcast %cst_46 : f32 to vector<16x16xf32>
    %72 = arith.mulf %71, %70 : vector<16x16xf32>
    %c0_47 = arith.constant 0 : index
    %c0_48 = arith.constant 0 : index
    %73 = vector.load %arg13[%c0_47, %c0_48] : memref<16x16xf32, #tpu.memory_space<vmem>>, vector<16x16xf32>
    tpu.vector_store %arg13[%c0_47, %c0_48], %72 {strides = array<i32>} : memref<16x16xf32, #tpu.memory_space<vmem>>, vector<16x16xf32>,
    return
  }
}

</mosaic_0001>

<llo_original>
// kernel: tpu_custom_call.1
$region0: #{tpu_custom_call.1}
  #allocation0 [shape = 'u32[]', space=smem, size = 0x4, offset = 0x4, fixed_abs, tag = 'smem constant byte address 0x4 - core index']
  #allocation1 [shape = 'u32[72,128]{1,0:T(1,128)}', space=vmem, size = 0x9000, scoped, tag = 'internal scratch']
  %s0 = inlined_call_operand.hbm [shape: f32[16,64], index: 0, kind: input, shape index: {}]
  %s1 = inlined_call_operand.hbm [shape: f32[16,16], index: 1, kind: input, shape index: {}]
  %s2 = inlined_call_operand.hbm [shape: f32[16,16], index: 2, kind: input, shape index: {}]
  %s3 = inlined_call_operand.vmem [shape: f32[64,32], index: 3, kind: input, shape index: {}]
  %s4 = inlined_call_operand.vmem [shape: f32[32,32], index: 4, kind: input, shape index: {}]
  %s5 = inlined_call_operand.vmem [shape: f32[32,32], index: 5, kind: input, shape index: {}]
  %s6 = inlined_call_operand.vmem [shape: f32[1,32], index: 6, kind: input, shape index: {}]
  %s7 = inlined_call_operand.vmem [shape: f32[32,32], index: 7, kind: input, shape index: {}]
  %s8 = inlined_call_operand.vmem [shape: f32[1,32], index: 8, kind: input, shape index: {}]
  %s9 = inlined_call_operand.hbm [shape: f32[16,32], index: 9, kind: output, shape index: {0}]
  %s10 = inlined_call_operand.hbm [shape: f32[16,32], index: 10, kind: output, shape index: {1}]
  %s11 = inlined_call_operand.hbm [shape: f32[16,32], index: 11, kind: output, shape index: {2}]
  %s12 = inlined_call_operand.hbm [shape: f32[16,32], index: 12, kind: output, shape index: {3}]
  %s13 = inlined_call_operand.hbm [shape: f32[16,16], index: 13, kind: output, shape index: {4}]
  %14 = xla_tuple %s9, %s10, %s11, %s12, %s13
  %s15 = sld [smem:[#allocation0]]
  $region90: #{tpu_custom_call.1} parent=0
    _
  %s17 = ssub.s32 1, %s15
  %s18 = scalar_select 0, %s17, %s15
  $region1: #{tpu_custom_call.1} parent=0
    #allocation2 [shape = 'u8[8192]{0}', space=vmem, size = 0x2000, scoped, tag = 'input window, operand 0, single buffered']
    #allocation3 [shape = 's32[1]{0}', space=sflag, size = 0x4, scoped, tag = 'scoped memory for tpu_custom_call.1']
    #allocation4 [shape = 's32[1]{0}', space=sflag, size = 0x4, scoped, tag = 'scoped memory for tpu_custom_call.1']
    #allocation5 [shape = 'u8[8192]{0}', space=vmem, size = 0x2000, scoped, tag = 'input window, operand 1, single buffered']
    #allocation6 [shape = 's32[1]{0}', space=sflag, size = 0x4, scoped, tag = 'scoped memory for tpu_custom_call.1']
    #allocation7 [shape = 'u8[8192]{0}', space=vmem, size = 0x2000, scoped, tag = 'input window, operand 2, single buffered']
    #allocation8 [shape = 'u8[8192]{0}', space=vmem, size = 0x2000, scoped, tag = 'output window, operand 0, single buffered']
    #allocation9 [shape = 'u8[8192]{0}', space=vmem, size = 0x2000, scoped, tag = 'output window, operand 1, single buffered']
    #allocation10 [shape = 's32[1]{0}', space=sflag, size = 0x4, scoped, tag = 'scoped memory for tpu_custom_call.1']
    #allocation11 [shape = 'u8[8192]{0}', space=vmem, size = 0x2000, scoped, tag = 'output window, operand 2, single buffered']
    #allocation12 [shape = 'u8[8192]{0}', space=vmem, size = 0x2000, scoped, tag = 'output window, operand 3, single buffered']
    #allocation13 [shape = 's32[1]{0}', space=sflag, size = 0x4, scoped, tag = 'scoped memory for tpu_custom_call.1']
    #allocation14 [shape = 'u8[8192]{0}', space=vmem, size = 0x2000, scoped, tag = 'output window, operand 4, single buffered']
    %19 = vsyncpa [#allocation3], 0
    %20 = vsyncpa [#allocation6], 0
    %21 = vsyncpa [#allocation4], 0
    %22 = vsyncpa [#allocation10], 0
    %23 = vsyncpa [#allocation13], 0
    // Predicated region
    $region2: #{tpu_custom_call.1} parent=1 // pred_check
      _
    $region3: #{tpu_custom_call.1} parent=1 // pred_check_branch
      %25 = sbr.rel (0) target = $region5
    $region4: #{tpu_custom_call.1} parent=1 // pred_region
      %27 = vsyncadd [#allocation3], 0
      %s28 = sshll.u32 %s0, 4
      %s29 = int_to_ptr.hbm [resolvable:$true] %s28
      %s30 = sshll.u32 [#allocation2], 4
      %s31 = int_to_ptr.vmem [resolvable:$true] %s30
      %36 = dma.hbm_to_vmem [thread:$0]  %s29, 256, %s31, [#allocation3], 128, 128, 8
    $region5: #{tpu_custom_call.1} parent=1 // pred_fallthru
      _
    // Predicated region
    $region6: #{tpu_custom_call.1} parent=1 // pred_check
      _
    $region7: #{tpu_custom_call.1} parent=1 // pred_check_branch
      %38 = sbr.rel (0) target = $region9
    $region8: #{tpu_custom_call.1} parent=1 // pred_region
      %40 = vsyncadd [#allocation6], 0
      %s41 = sshll.u32 %s1, 4
      %s42 = int_to_ptr.hbm [resolvable:$true] %s41
      %s43 = sshll.u32 [#allocation5], 4
      %s44 = int_to_ptr.vmem [resolvable:$true] %s43
      %49 = dma.hbm_to_vmem [thread:$0]  %s42, 256, %s44, [#allocation6], 128, 128, 8
    $region9: #{tpu_custom_call.1} parent=1 // pred_fallthru
      _
    // Predicated region
    $region10: #{tpu_custom_call.1} parent=1 // pred_check
      _
    $region11: #{tpu_custom_call.1} parent=1 // pred_check_branch
      %51 = sbr.rel (0) target = $region13
    $region12: #{tpu_custom_call.1} parent=1 // pred_region
      %53 = vsyncadd [#allocation6], 0
      %s54 = sshll.u32 %s2, 4
      %s55 = int_to_ptr.hbm [resolvable:$true] %s54
      %s56 = sshll.u32 [#allocation7], 4
      %s57 = int_to_ptr.vmem [resolvable:$true] %s56
      %62 = dma.hbm_to_vmem [thread:$0]  %s55, 256, %s57, [#allocation6], 128, 128, 8
    $region13: #{tpu_custom_call.1} parent=1 // pred_fallthru
      _
    // Predicated region
    $region14: #{tpu_custom_call.1} parent=1 // pred_check
      _
    $region15: #{tpu_custom_call.1} parent=1 // pred_check_branch
      %64 = sbr.rel (0) target = $region17
    $region16: #{tpu_custom_call.1} parent=1 // pred_region
      _
    $region17: #{tpu_custom_call.1} parent=1 // pred_fallthru
      _
    // Predicated region
    $region18: #{tpu_custom_call.1} parent=1 // pred_check
      _
    $region19: #{tpu_custom_call.1} parent=1 // pred_check_branch
      %66 = sbr.rel (0) target = $region21
    $region20: #{tpu_custom_call.1} parent=1 // pred_region
      _
    $region21: #{tpu_custom_call.1} parent=1 // pred_fallthru
      _
    // Predicated region
    $region22: #{tpu_custom_call.1} parent=1 // pred_check
      _
    $region23: #{tpu_custom_call.1} parent=1 // pred_check_branch
      %68 = sbr.rel (0) target = $region25
    $region24: #{tpu_custom_call.1} parent=1 // pred_region
      _
    $region25: #{tpu_custom_call.1} parent=1 // pred_fallthru
      _
    // Predicated region
    $region26: #{tpu_custom_call.1} parent=1 // pred_check
      _
    $region27: #{tpu_custom_call.1} parent=1 // pred_check_branch
      %70 = sbr.rel (0) target = $region29
    $region28: #{tpu_custom_call.1} parent=1 // pred_region
      _
    $region29: #{tpu_custom_call.1} parent=1 // pred_fallthru
      _
    // Predicated region
    $region30: #{tpu_custom_call.1} parent=1 // pred_check
      _
    $region31: #{tpu_custom_call.1} parent=1 // pred_check_branch
      %72 = sbr.rel (0) target = $region33
    $region32: #{tpu_custom_call.1} parent=1 // pred_region
      _
    $region33: #{tpu_custom_call.1} parent=1 // pred_fallthru
      _
    // Predicated region
    $region34: #{tpu_custom_call.1} parent=1 // pred_check
      _
    $region35: #{tpu_custom_call.1} parent=1 // pred_check_branch
      %74 = sbr.rel (0) target = $region37
    $region36: #{tpu_custom_call.1} parent=1 // pred_region
      _
    $region37: #{tpu_custom_call.1} parent=1 // pred_fallthru
      _
    // Predicated region
    $region38: #{tpu_custom_call.1} parent=1 // pred_check
      _
    $region39: #{tpu_custom_call.1} parent=1 // pred_check_branch
      %76 = sbr.rel (0) target = $region41
    $region40: #{tpu_custom_call.1} parent=1 // pred_region
      %78 = dma.done [#allocation3], 256
    $region41: #{tpu_custom_call.1} parent=1 // pred_fallthru
      _
    // Predicated region
    $region42: #{tpu_custom_call.1} parent=1 // pred_check
      _
    $region43: #{tpu_custom_call.1} parent=1 // pred_check_branch
      %80 = sbr.rel (0) target = $region45
    $region44: #{tpu_custom_call.1} parent=1 // pred_region
      %82 = dma.done [#allocation6], 256
    $region45: #{tpu_custom_call.1} parent=1 // pred_fallthru
      _
    // Predicated region
    $region46: #{tpu_custom_call.1} parent=1 // pred_check
      _
    $region47: #{tpu_custom_call.1} parent=1 // pred_check_branch
      %84 = sbr.rel (0) target = $region49
    $region48: #{tpu_custom_call.1} parent=1 // pred_region
      %86 = dma.done [#allocation6], 256
    $region49: #{tpu_custom_call.1} parent=1 // pred_fallthru
      _
    %v87 = vld [vmem:[#allocation5] sm:$0xff]
    %v88 = vld [vmem:[#allocation5 + $0x8] sm:$0xff]
    %v89 = vld [vmem:[#allocation7] sm:$0xff]
    %v90 = vld [vmem:[#allocation7 + $0x8] sm:$0xff]
    %v91 = vld [vmem:[#allocation2] sm:$0xff]
    %v92 = vld [vmem:[#allocation2 + $0x8] sm:$0xff]
    %v93 = vld [vmem:[%s3] sm:$0xff]
    %v94 = vld [vmem:[%s3 + $0x8] sm:$0xff]
    %v95 = vld [vmem:[%s3 + $0x10] sm:$0xff]
    %v96 = vld [vmem:[%s3 + $0x18] sm:$0xff]
    %v97 = vld [vmem:[%s3 + $0x20] sm:$0xff]
    %v98 = vld [vmem:[%s3 + $0x28] sm:$0xff]
    %v99 = vld [vmem:[%s3 + $0x30] sm:$0xff]
    %v100 = vld [vmem:[%s3 + $0x38] sm:$0xff]
    %vm101 = vcmask 523264
    %v103 = vsel %vm101, %v91, 0
    %v106 = vsel %vm101, %v92, 0
    %108 = vmatpush.msra.mxu0 0.0
    %109 = vmatpush.msra.mxu0 0.0
    %110 = vmatpush.msra.mxu0 0.0
    %111 = vmatpush.msra.mxu0 0.0
    %112 = vmatpush.msra.mxu0 0.0
    %113 = vmatpush.msra.mxu0 0.0
    %114 = vmatpush.msra.mxu0 0.0
    %115 = vmatpush.msra.mxu0 0.0
    %116 = vmatpush.msra.mxu0 %v100
    %117 = vmatpush.msra.mxu0 %v99
    %118 = vmatpush.msra.mxu0 %v98
    %119 = vmatpush.msra.mxu0 %v97
    %120 = vmatpush.msra.mxu0 %v96
    %121 = vmatpush.msra.mxu0 %v95
    %122 = vmatpush.msra.mxu0 %v94
    %123 = vmatpush.msra.mxu0 %v93
    %124 = vmatmul.f32.gmra.mxu0 %v103
    %v125 = vpop.f32.mrf.mxu0
    %v126 = vadd.f32 0.0, %v125
    %127 = vmatmul.f32.gmra.mxu0 %v106
    %v128 = vpop.f32.mrf.mxu0
    %v129 = vadd.f32 0.0, %v128
    %130 = vdwg.mxu0
    %vm131 = vcmask 130048
    %v133 = vsel %vm131, %v87, 0
    %v136 = vsel %vm131, %v88, 0
    %138 = vmatpush.msra.mxu0 0.0
    %139 = vmatpush.msra.mxu0 0.0
    %140 = vmatpush.msra.mxu0 0.0
    %141 = vmatpush.msra.mxu0 0.0
    %142 = vmatpush.msra.mxu0 0.0
    %143 = vmatpush.msra.mxu0 0.0
    %144 = vmatpush.msra.mxu0 0.0
    %145 = vmatpush.msra.mxu0 0.0
    %146 = vmatpush.msra.mxu0 0.0
    %147 = vmatpush.msra.mxu0 0.0
    %148 = vmatpush.msra.mxu0 0.0
    %149 = vmatpush.msra.mxu0 0.0
    %150 = vmatpush.msra.mxu0 0.0
    %151 = vmatpush.msra.mxu0 0.0
    %152 = vmatpush.msra.mxu0 %v129
    %153 = vmatpush.msra.mxu0 %v126
    %154 = vmatmul.f32.gmra.mxu0 %v133
    %v155 = vpop.f32.mrf.mxu0
    %v156 = vadd.f32 0.0, %v155
    %157 = vmatmul.f32.gmra.mxu0 %v136
    %v158 = vpop.f32.mrf.mxu0
    %v159 = vadd.f32 0.0, %v158
    %160 = vdwg.mxu0
    %vm161 = vcmask 261120
    %162 = vst.msk [vmem:[#allocation8] sm:$0xff] %vm161, %v156
    %163 = vst.msk [vmem:[#allocation8 + $0x8] sm:$0xff] %vm161, %v159
    %v164 = vld [vmem:[%s4] sm:$0xff]
    %v165 = vld [vmem:[%s4 + $0x8] sm:$0xff]
    %v166 = vld [vmem:[%s4 + $0x10] sm:$0xff]
    %v167 = vld [vmem:[%s4 + $0x18] sm:$0xff]
    %v169 = vsel %vm161, %v156, 0
    %v172 = vsel %vm161, %v159, 0
    %174 = vmatpush.msra.mxu0 0.0
    %175 = vmatpush.msra.mxu0 0.0
    %176 = vmatpush.msra.mxu0 0.0
    %177 = vmatpush.msra.mxu0 0.0
    %178 = vmatpush.msra.mxu0 0.0
    %179 = vmatpush.msra.mxu0 0.0
    %180 = vmatpush.msra.mxu0 0.0
    %181 = vmatpush.msra.mxu0 0.0
    %182 = vmatpush.msra.mxu0 0.0
    %183 = vmatpush.msra.mxu0 0.0
    %184 = vmatpush.msra.mxu0 0.0
    %185 = vmatpush.msra.mxu0 0.0
    %186 = vmatpush.msra.mxu0 %v167
    %187 = vmatpush.msra.mxu0 %v166
    %188 = vmatpush.msra.mxu0 %v165
    %189 = vmatpush.msra.mxu0 %v164
    %190 = vmatmul.f32.gmra.mxu0 %v169
    %v191 = vpop.f32.mrf.mxu0
    %v192 = vadd.f32 0.0, %v191
    %193 = vmatmul.f32.gmra.mxu0 %v172
    %v194 = vpop.f32.mrf.mxu0
    %v195 = vadd.f32 0.0, %v194
    %196 = vdwg.mxu0
    %197 = vmatpush.msra.mxu0 0.0
    %198 = vmatpush.msra.mxu0 0.0
    %199 = vmatpush.msra.mxu0 0.0
    %200 = vmatpush.msra.mxu0 0.0
    %201 = vmatpush.msra.mxu0 0.0
    %202 = vmatpush.msra.mxu0 0.0
    %203 = vmatpush.msra.mxu0 0.0
    %204 = vmatpush.msra.mxu0 0.0
    %205 = vmatpush.msra.mxu0 0.0
    %206 = vmatpush.msra.mxu0 0.0
    %207 = vmatpush.msra.mxu0 0.0
    %208 = vmatpush.msra.mxu0 0.0
    %209 = vmatpush.msra.mxu0 0.0
    %210 = vmatpush.msra.mxu0 0.0
    %211 = vmatpush.msra.mxu0 %v195
    %212 = vmatpush.msra.mxu0 %v192
    %213 = vmatmul.f32.gmra.mxu0 %v133
    %v214 = vpop.f32.mrf.mxu0
    %v215 = vadd.f32 0.0, %v214
    %216 = vmatmul.f32.gmra.mxu0 %v136
    %v217 = vpop.f32.mrf.mxu0
    %v218 = vadd.f32 0.0, %v217
    %219 = vdwg.mxu0
    %220 = vst.msk [vmem:[#allocation9] sm:$0xff] %vm161, %v215
    %221 = vst.msk [vmem:[#allocation9 + $0x8] sm:$0xff] %vm161, %v218
    %v222 = vmax.f32 %v156, 0.0
    %v223 = vmax.f32 %v159, 0.0
    %v224 = vld [vmem:[%s5] sm:$0xff]
    %v225 = vld [vmem:[%s5 + $0x8] sm:$0xff]
    %v226 = vld [vmem:[%s5 + $0x10] sm:$0xff]
    %v227 = vld [vmem:[%s5 + $0x18] sm:$0xff]
    %v228 = vld [vmem:[%s6] sm:$0x1]
    %v230 = vperm.slane %v228, 0
    %v233 = vsel %vm161, %v222, 0
    %v236 = vsel %vm161, %v223, 0
    %238 = vmatpush.msra.mxu0 0.0
    %239 = vmatpush.msra.mxu0 0.0
    %240 = vmatpush.msra.mxu0 0.0
    %241 = vmatpush.msra.mxu0 0.0
    %242 = vmatpush.msra.mxu0 0.0
    %243 = vmatpush.msra.mxu0 0.0
    %244 = vmatpush.msra.mxu0 0.0
    %245 = vmatpush.msra.mxu0 0.0
    %246 = vmatpush.msra.mxu0 0.0
    %247 = vmatpush.msra.mxu0 0.0
    %248 = vmatpush.msra.mxu0 0.0
    %249 = vmatpush.msra.mxu0 0.0
    %250 = vmatpush.msra.mxu0 %v227
    %251 = vmatpush.msra.mxu0 %v226
    %252 = vmatpush.msra.mxu0 %v225
    %253 = vmatpush.msra.mxu0 %v224
    %254 = vmatmul.f32.gmra.mxu0 %v233
    %v255 = vpop.f32.mrf.mxu0
    %v256 = vadd.f32 %v230, %v255
    %257 = vmatmul.f32.gmra.mxu0 %v236
    %v258 = vpop.f32.mrf.mxu0
    %v259 = vadd.f32 %v230, %v258
    %260 = vdwg.mxu0
    %v261 = vmax.f32 %v256, 0.0
    %v262 = vmax.f32 %v259, 0.0
    %v263 = vld [vmem:[%s7] sm:$0xff]
    %v264 = vld [vmem:[%s7 + $0x8] sm:$0xff]
    %v265 = vld [vmem:[%s7 + $0x10] sm:$0xff]
    %v266 = vld [vmem:[%s7 + $0x18] sm:$0xff]
    %v267 = vld [vmem:[%s8] sm:$0x1]
    %v269 = vperm.slane %v267, 0
    %v272 = vsel %vm161, %v261, 0
    %v275 = vsel %vm161, %v262, 0
    %277 = vmatpush.msra.mxu0 0.0
    %278 = vmatpush.msra.mxu0 0.0
    %279 = vmatpush.msra.mxu0 0.0
    %280 = vmatpush.msra.mxu0 0.0
    %281 = vmatpush.msra.mxu0 0.0
    %282 = vmatpush.msra.mxu0 0.0
    %283 = vmatpush.msra.mxu0 0.0
    %284 = vmatpush.msra.mxu0 0.0
    %285 = vmatpush.msra.mxu0 0.0
    %286 = vmatpush.msra.mxu0 0.0
    %287 = vmatpush.msra.mxu0 0.0
    %288 = vmatpush.msra.mxu0 0.0
    %289 = vmatpush.msra.mxu0 %v266
    %290 = vmatpush.msra.mxu0 %v265
    %291 = vmatpush.msra.mxu0 %v264
    %292 = vmatpush.msra.mxu0 %v263
    %293 = vmatmul.f32.gmra.mxu0 %v272
    %v294 = vpop.f32.mrf.mxu0
    %v295 = vadd.f32 %v269, %v294
    %296 = vmatmul.f32.gmra.mxu0 %v275
    %v297 = vpop.f32.mrf.mxu0
    %v298 = vadd.f32 %v269, %v297
    %299 = vdwg.mxu0
    %300 = vst.msk [vmem:[#allocation11] sm:$0xff] %vm161, %v295
    %301 = vst.msk [vmem:[#allocation11 + $0x8] sm:$0xff] %vm161, %v298
    %v302 = vsel %vm131, %v89, 0.0
    %303 = vadd.xlane.f32.xlu0 %v302
    %v304 = vpop.xlane.xlu0 %303
    %v305 = vsel %vm131, %v90, 0.0
    %306 = vadd.xlane.f32.xlu0 %v305
    %v307 = vpop.xlane.xlu0 %306
    %v308 = vrcp.pop %v304
    %v309 = vrcp.pop %v307
    %v311 = vsel %vm131, %v89, 0
    %v314 = vsel %vm131, %v90, 0
    %316 = vmatpush.msra.mxu0 0.0
    %317 = vmatpush.msra.mxu0 0.0
    %318 = vmatpush.msra.mxu0 0.0
    %319 = vmatpush.msra.mxu0 0.0
    %320 = vmatpush.msra.mxu0 0.0
    %321 = vmatpush.msra.mxu0 0.0
    %322 = vmatpush.msra.mxu0 0.0
    %323 = vmatpush.msra.mxu0 0.0
    %324 = vmatpush.msra.mxu0 0.0
    %325 = vmatpush.msra.mxu0 0.0
    %326 = vmatpush.msra.mxu0 0.0
    %327 = vmatpush.msra.mxu0 0.0
    %328 = vmatpush.msra.mxu0 0.0
    %329 = vmatpush.msra.mxu0 0.0
    %330 = vmatpush.msra.mxu0 %v223
    %331 = vmatpush.msra.mxu0 %v222
    %332 = vmatmul.f32.gmra.mxu0 %v311
    %v333 = vpop.f32.mrf.mxu0
    %v334 = vadd.f32 0.0, %v333
    %335 = vmatmul.f32.gmra.mxu0 %v314
    %v336 = vpop.f32.mrf.mxu0
    %v337 = vadd.f32 0.0, %v336
    %338 = vdwg.mxu0
    %v339 = vmul.f32 %v334, %v308
    %v340 = vmul.f32 %v337, %v309
    %v341 = vlaneseq
    %v342 = vand.u32 %v341, 127
    %vm343 = vcmp.lt.s32.totalorder %v342, 16
    %v344 = vmul.f32 %v339, %v339
    %v345 = vmul.f32 %v340, %v340
    %v346 = vsel %vm161, %v344, 0.0
    %347 = vadd.xlane.f32.xlu0 %v346
    %v348 = vpop.xlane.xlu0 %347
    %v349 = vsel %vm161, %v345, 0.0
    %350 = vadd.xlane.f32.xlu0 %v349
    %v351 = vpop.xlane.xlu0 %350
    %v352 = vsel %vm343, %v344, 0.0
    %v353 = vsel %vm343, %v345, 0.0
    %v354 = vsel %vm161, %v352, 0.0
    %355 = vadd.xlane.f32.xlu0 %v354
    %v356 = vpop.xlane.xlu0 %355
    %v357 = vsel %vm161, %v353, 0.0
    %358 = vadd.xlane.f32.xlu0 %v357
    %v359 = vpop.xlane.xlu0 %358
    %v360 = vsub.f32 %v348, %v356
    %v361 = vsub.f32 %v351, %v359
    %v362 = vmax.f32 %v356, 1e-24
    %v363 = vmax.f32 %v359, 1e-24
    %v364 = vrsqrt.pop %v362
    %v365 = vmul.f32 %v364, %v362
    %v366 = vmul.f32 %v365, %v364
    %v367 = vmul.f32 0.5, %v366
    %v368 = vsub.f32 1.5, %v367
    %v369 = vmul.f32 %v364, %v368
    %vm370 = vweird.f32 %v362
    %vm371 = vweird.f32 %v364
    %vm372 = vmor %vm370, %vm371
    %v373 = vsel %vm372, %v364, %v369
    %v374 = vrsqrt.pop %v363
    %v375 = vmul.f32 %v374, %v363
    %v376 = vmul.f32 %v375, %v374
    %v377 = vmul.f32 0.5, %v376
    %v378 = vsub.f32 1.5, %v377
    %v379 = vmul.f32 %v374, %v378
    %vm380 = vweird.f32 %v363
    %vm381 = vweird.f32 %v374
    %vm382 = vmor %vm380, %vm381
    %v383 = vsel %vm382, %v374, %v379
    %v384 = vmax.f32 %v360, 1e-24
    %v385 = vmax.f32 %v361, 1e-24
    %v386 = vrsqrt.pop %v384
    %v387 = vmul.f32 %v386, %v384
    %v388 = vmul.f32 %v387, %v386
    %v389 = vmul.f32 0.5, %v388
    %v390 = vsub.f32 1.5, %v389
    %v391 = vmul.f32 %v386, %v390
    %vm392 = vweird.f32 %v384
    %vm393 = vweird.f32 %v386
    %vm394 = vmor %vm392, %vm393
    %v395 = vsel %vm394, %v386, %v391
    %v396 = vrsqrt.pop %v385
    %v397 = vmul.f32 %v396, %v385
    %v398 = vmul.f32 %v397, %v396
    %v399 = vmul.f32 0.5, %v398
    %v400 = vsub.f32 1.5, %v399
    %v401 = vmul.f32 %v396, %v400
    %vm402 = vweird.f32 %v385
    %vm403 = vweird.f32 %v396
    %vm404 = vmor %vm402, %vm403
    %v405 = vsel %vm404, %v396, %v401
    %v406 = vsel %vm343, %v373, %v395
    %v407 = vsel %vm343, %v383, %v405
    %v408 = vmul.f32 %v339, %v406
    %v409 = vmul.f32 %v340, %v407
    %v410 = vmul.f32 %v408, 0.5
    %v411 = vmul.f32 %v409, 0.5
    %v412 = vtanh.pop %v410
    %v413 = vtanh.pop %v411
    %v414 = vadd.f32 %v412, 1.0
    %v415 = vadd.f32 %v413, 1.0
    %v416 = vmul.f32 %v414, 0.5
    %v417 = vmul.f32 %v415, 0.5
    %418 = vst.msk [vmem:[#allocation12] sm:$0xff] %vm161, %v416
    %419 = vst.msk [vmem:[#allocation12 + $0x8] sm:$0xff] %vm161, %v417
    %v420 = vsel %vm343, %v222, 0.0
    %v421 = vsel %vm343, %v223, 0.0
    %v423 = vsel %vm161, %v420, 0
    %v426 = vsel %vm161, %v421, 0
    %428 = vmatpush.xpose.msra.mxu0 0.0
    %429 = vmatpush.xpose.msra.mxu0 0.0
    %430 = vmatpush.xpose.msra.mxu0 0.0
    %431 = vmatpush.xpose.msra.mxu0 0.0
    %432 = vmatpush.xpose.msra.mxu0 0.0
    %433 = vmatpush.xpose.msra.mxu0 0.0
    %434 = vmatpush.xpose.msra.mxu0 0.0
    %435 = vmatpush.xpose.msra.mxu0 0.0
    %436 = vmatpush.xpose.msra.mxu0 0.0
    %437 = vmatpush.xpose.msra.mxu0 0.0
    %438 = vmatpush.xpose.msra.mxu0 0.0
    %439 = vmatpush.xpose.msra.mxu0 0.0
    %440 = vmatpush.xpose.msra.mxu0 0.0
    %441 = vmatpush.xpose.msra.mxu0 0.0
    %442 = vmatpush.xpose.msra.mxu0 %v426
    %443 = vmatpush.xpose.msra.mxu0 %v423
    %444 = vmatmul.f32.gmra.mxu0 %v423
    %v445 = vpop.f32.mrf.mxu0
    %v446 = vadd.f32 0.0, %v445
    %447 = vmatmul.f32.gmra.mxu0 %v426
    %v448 = vpop.f32.mrf.mxu0
    %v449 = vadd.f32 0.0, %v448
    %450 = vdwg.mxu0
    %v451 = vmul.f32 %v446, 0.5
    %v452 = vmul.f32 %v449, 0.5
    %v453 = vtanh.pop %v451
    %v454 = vtanh.pop %v452
    %v455 = vadd.f32 %v453, 1.0
    %v456 = vadd.f32 %v454, 1.0
    %v457 = vmul.f32 %v455, 0.5
    %v458 = vmul.f32 %v456, 0.5
    %459 = vst.msk [vmem:[#allocation14] sm:$0xff] %vm131, %v457
    %460 = vst.msk [vmem:[#allocation14 + $0x8] sm:$0xff] %vm131, %v458
    // Predicated region
    $region50: #{tpu_custom_call.1} parent=1 // pred_check
      _
    $region51: #{tpu_custom_call.1} parent=1 // pred_check_branch
      %462 = sbr.rel (0) target = $region53
    $region52: #{tpu_custom_call.1} parent=1 // pred_region
      %464 = vsyncadd [#allocation4], 0
      %s465 = sshll.u32 [#allocation8], 4
      %s466 = int_to_ptr.vmem [resolvable:$true] %s465
      %s467 = sshll.u32 %s9, 4
      %s468 = int_to_ptr.hbm [resolvable:$true] %s467
      %473 = dma.vmem_to_hbm [thread:$0]  %s466, 256, %s468, [#allocation4], 128, 128, 8
    $region53: #{tpu_custom_call.1} parent=1 // pred_fallthru
      _
    // Predicated region
    $region54: #{tpu_custom_call.1} parent=1 // pred_check
      _
    $region55: #{tpu_custom_call.1} parent=1 // pred_check_branch
      %475 = sbr.rel (0) target = $region57
    $region56: #{tpu_custom_call.1} parent=1 // pred_region
      %477 = vsyncadd [#allocation10], 0
      %s478 = sshll.u32 [#allocation9], 4
      %s479 = int_to_ptr.vmem [resolvable:$true] %s478
      %s480 = sshll.u32 %s10, 4
      %s481 = int_to_ptr.hbm [resolvable:$true] %s480
      %486 = dma.vmem_to_hbm [thread:$0]  %s479, 256, %s481, [#allocation10], 128, 128, 8
    $region57: #{tpu_custom_call.1} parent=1 // pred_fallthru
      _
    // Predicated region
    $region58: #{tpu_custom_call.1} parent=1 // pred_check
      _
    $region59: #{tpu_custom_call.1} parent=1 // pred_check_branch
      %488 = sbr.rel (0) target = $region61
    $region60: #{tpu_custom_call.1} parent=1 // pred_region
      %490 = vsyncadd [#allocation10], 0
      %s491 = sshll.u32 [#allocation11], 4
      %s492 = int_to_ptr.vmem [resolvable:$true] %s491
      %s493 = sshll.u32 %s11, 4
      %s494 = int_to_ptr.hbm [resolvable:$true] %s493
      %499 = dma.vmem_to_hbm [thread:$0]  %s492, 256, %s494, [#allocation10], 128, 128, 8
    $region61: #{tpu_custom_call.1} parent=1 // pred_fallthru
      _
    // Predicated region
    $region62: #{tpu_custom_call.1} parent=1 // pred_check
      _
    $region63: #{tpu_custom_call.1} parent=1 // pred_check_branch
      %501 = sbr.rel (0) target = $region65
    $region64: #{tpu_custom_call.1} parent=1 // pred_region
      %503 = vsyncadd [#allocation13], 0
      %s504 = sshll.u32 [#allocation12], 4
      %s505 = int_to_ptr.vmem [resolvable:$true] %s504
      %s506 = sshll.u32 %s12, 4
      %s507 = int_to_ptr.hbm [resolvable:$true] %s506
      %512 = dma.vmem_to_hbm [thread:$0]  %s505, 256, %s507, [#allocation13], 128, 128, 8
    $region65: #{tpu_custom_call.1} parent=1 // pred_fallthru
      _
    // Predicated region
    $region66: #{tpu_custom_call.1} parent=1 // pred_check
      _
    $region67: #{tpu_custom_call.1} parent=1 // pred_check_branch
      %514 = sbr.rel (0) target = $region69
    $region68: #{tpu_custom_call.1} parent=1 // pred_region
      %516 = vsyncadd [#allocation13], 0
      %s517 = sshll.u32 [#allocation14], 4
      %s518 = int_to_ptr.vmem [resolvable:$true] %s517
      %s519 = sshll.u32 %s13, 4
      %s520 = int_to_ptr.hbm [resolvable:$true] %s519
      %525 = dma.vmem_to_hbm [thread:$0]  %s518, 256, %s520, [#allocation13], 128, 128, 8
    $region69: #{tpu_custom_call.1} parent=1 // pred_fallthru
      _
    // Predicated region
    $region70: #{tpu_custom_call.1} parent=1 // pred_check
      _
    $region71: #{tpu_custom_call.1} parent=1 // pred_check_branch
      %527 = sbr.rel (0) target = $region73
    $region72: #{tpu_custom_call.1} parent=1 // pred_region
      %529 = dma.done [#allocation4], 256
    $region73: #{tpu_custom_call.1} parent=1 // pred_fallthru
      _
    // Predicated region
    $region74: #{tpu_custom_call.1} parent=1 // pred_check
      _
    $region75: #{tpu_custom_call.1} parent=1 // pred_check_branch
      %531 = sbr.rel (0) target = $region77
    $region76: #{tpu_custom_call.1} parent=1 // pred_region
      %533 = dma.done [#allocation10], 256
    $region77: #{tpu_custom_call.1} parent=1 // pred_fallthru
      _
    // Predicated region
    $region78: #{tpu_custom_call.1} parent=1 // pred_check
      _
    $region79: #{tpu_custom_call.1} parent=1 // pred_check_branch
      %535 = sbr.rel (0) target = $region81
    $region80: #{tpu_custom_call.1} parent=1 // pred_region
      %537 = dma.done [#allocation10], 256
    $region81: #{tpu_custom_call.1} parent=1 // pred_fallthru
      _
    // Predicated region
    $region82: #{tpu_custom_call.1} parent=1 // pred_check
      _
    $region83: #{tpu_custom_call.1} parent=1 // pred_check_branch
      %539 = sbr.rel (0) target = $region85
    $region84: #{tpu_custom_call.1} parent=1 // pred_region
      %541 = dma.done [#allocation13], 256
    $region85: #{tpu_custom_call.1} parent=1 // pred_fallthru
      _
    // Predicated region
    $region86: #{tpu_custom_call.1} parent=1 // pred_check
      _
    $region87: #{tpu_custom_call.1} parent=1 // pred_check_branch
      %543 = sbr.rel (0) target = $region89
    $region88: #{tpu_custom_call.1} parent=1 // pred_region
      %545 = dma.done [#allocation13], 256
    $region89: #{tpu_custom_call.1} parent=1 // pred_fallthru
      _
    %546 = vsyncpa [#allocation3], 1
    %547 = vsyncpa [#allocation6], 1
    %548 = vsyncpa [#allocation4], 1
    %549 = vsyncpa [#allocation10], 1
    %550 = vsyncpa [#allocation13], 1

</llo_original>
